<compile_context>
chip_gen: v7x
topology: tpu7x:2x2x1
jax: 0.10.0
libtpu: 0.0.40
codegen_flags: <defaults>
</compile_context>

<pallas_src>
import jax
import jax.numpy as jnp
import numpy as np
from jax.experimental import pallas as pl
from jax.experimental.pallas import tpu as pltpu

_LANE = 128


def _normalize3_kernel(params_ref, x1_ref, x2_ref, x3_ref,
                       o1_ref, o2_ref, o3_ref):
    m = params_ref[:, 0:1]       # (TM, 1) f32, lane-broadcast by the VPU
    inv_s = params_ref[:, 1:2]   # (TM, 1) f32
    o1_ref[...] = ((x1_ref[...] - m) * inv_s).astype(o1_ref.dtype)
    o2_ref[...] = ((x2_ref[...] - m) * inv_s).astype(o2_ref.dtype)
    o3_ref[...] = ((x3_ref[...] - m) * inv_s).astype(o3_ref.dtype)


def _vmem_budget():
    """Generation-aware (per-stream tile target, scoped VMEM limit)."""
    try:
        cap = int(pltpu.get_tpu_info().vmem_capacity_bytes)
    except Exception:
        cap = 64 << 20  # conservative (v7x-sized) default
    if cap >= (100 << 20):          # v5e / v6e: 128 MiB physical VMEM
        return 4 << 20, 96 << 20
    return 2 << 20, 48 << 20        # v7x: 64 MiB VMEM per TensorCore


def _choose_tiles(rows, L, itemsize, target_bytes, sublane):
    """Pick a (TM, TL) block with per-stream tile <= target_bytes.

    TM is a multiple of the dtype sublane count (or == rows when rows is
    smaller); TL is a multiple of 128 (or == L).  Edge blocks that do not
    divide the array are handled by Pallas' bounds-clamped DMAs, so neither
    tile has to divide the array shape.  Whenever rows*L*itemsize exceeds
    target_bytes the resulting grid has >= 2 steps (keeps the software
    pipeline and v7x's second TensorCore busy).
    """
    row_bytes = L * itemsize
    total_bytes = rows * row_bytes
    if total_bytes <= target_bytes:
        return rows, L  # everything fits in a single block

    tm_min = rows if rows < sublane else sublane
    if tm_min * row_bytes > target_bytes:
        # Even the minimal legal row block is too big: tile the lane axis too.
        tl = (target_bytes // (tm_min * itemsize)) // _LANE * _LANE
        tl = max(_LANE, tl)
        if tl >= L:
            tl = L
        return tm_min, tl

    # Full rows are cheap: tile the row axis only, full L per block.
    tm = (target_bytes // row_bytes) // sublane * sublane
    tm = max(sublane, min(tm, rows))
    return tm, L


def normalize_three_instances(x1, x2, x3, mean, std, *,
                              target_tile_bytes=None, vmem_limit_bytes=None):
    """Pallas equivalent of NormalizeThreeInstances.forward (out-of-place)."""
    assert x1.shape == x2.shape == x3.shape
    assert x1.dtype == x2.dtype == x3.dtype
    N, C, H, W = x1.shape
    mean = jnp.asarray(mean, dtype=jnp.float32).reshape(C)
    std = jnp.asarray(std, dtype=jnp.float32).reshape(C)

    rows, L = N * C, H * W
    x1f = x1.reshape(rows, L)
    x2f = x2.reshape(rows, L)
    x3f = x3.reshape(rows, L)

    # Per-row (n, c) channel parameters packed into a single (rows, 2) array.
    # TODO(synk): torchvision casts mean/std to the tensor dtype before the
    # divide; we keep f32 params (<=1 ulp difference for low-precision inputs).
    params = jnp.stack([jnp.tile(mean, N), jnp.tile(1.0 / std, N)], axis=1)

    itemsize = jnp.dtype(x1.dtype).itemsize
    sublane = {4: 8, 2: 16, 1: 32}.get(itemsize, 8)

    auto_target, auto_limit = _vmem_budget()
    target = auto_target if target_tile_bytes is None else target_tile_bytes
    limit = auto_limit if vmem_limit_bytes is None else vmem_limit_bytes

    TM, TL = _choose_tiles(rows, L, itemsize, target, sublane)
    grid = (pl.cdiv(rows, TM), pl.cdiv(L, TL))

    img_spec = pl.BlockSpec((TM, TL), lambda i, j: (i, j))
    par_spec = pl.BlockSpec((TM, 2), lambda i, j: (i, 0))
    out_shape = jax.ShapeDtypeStruct((rows, L), x1.dtype)

    cost = pl.CostEstimate(
        flops=2 * 3 * rows * L,
        transcendentals=0,
        bytes_accessed=6 * rows * L * itemsize + params.size * 4,
    )

    fn = pl.pallas_call(
        _normalize3_kernel,
        out_shape=(out_shape, out_shape, out_shape),
        grid=grid,
        in_specs=[par_spec, img_spec, img_spec, img_spec],
        out_specs=(img_spec, img_spec, img_spec),
        compiler_params=pltpu.CompilerParams(
            dimension_semantics=("parallel", "parallel"),
            vmem_limit_bytes=limit,
        ),
        cost_estimate=cost,
    )
    o1, o2, o3 = fn(params, x1f, x2f, x3f)
    return (o1.reshape(N, C, H, W),
            o2.reshape(N, C, H, W),
            o3.reshape(N, C, H, W))


if __name__ == "__main__":
    def ref(x, mean, std):
        return (x - mean[None, :, None, None]) / std[None, :, None, None]

    # --- primary small-shape run (module-consistent) ------------------------
    k1, k2, k3 = jax.random.split(jax.random.PRNGKey(0), 3)
    N, C, H, W = 2, 4, 16, 16
    x1 = jax.random.normal(k1, (N, C, H, W), dtype=jnp.float32)
    x2 = jax.random.normal(k2, (N, C, H, W), dtype=jnp.float32)
    x3 = jax.random.normal(k3, (N, C, H, W), dtype=jnp.float32)
    mean = jnp.array([0.1, 0.2, 0.3, 0.4], dtype=jnp.float32)
    std = jnp.array([0.5, 0.6, 0.7, 0.8], dtype=jnp.float32)

    o1, o2, o3 = normalize_three_instances(x1, x2, x3, mean, std)
    jax.block_until_ready((o1, o2, o3))
    for o, x in ((o1, x1), (o2, x2), (o3, x3)):
        np.testing.assert_allclose(np.asarray(o), np.asarray(ref(x, mean, std)),
                                   rtol=1e-6, atol=1e-6)

    # --- robustness check: rows not a multiple of 8 + forced multi-block grid
    # (exercises the 2-D tiling / partial-block path used for real C=3 images)
    k4, k5, k6 = jax.random.split(jax.random.PRNGKey(1), 3)
    N2, C2, H2, W2 = 2, 3, 16, 90            # rows=6, L=1440 (not /128)
    y1 = jax.random.normal(k4, (N2, C2, H2, W2), dtype=jnp.float32)
    y2 = jax.random.normal(k5, (N2, C2, H2, W2), dtype=jnp.float32)
    y3 = jax.random.normal(k6, (N2, C2, H2, W2), dtype=jnp.float32)
    mean2 = jnp.array([0.485, 0.456, 0.406], dtype=jnp.float32)
    std2 = jnp.array([0.229, 0.224, 0.225], dtype=jnp.float32)

    p1, p2, p3 = normalize_three_instances(
        y1, y2, y3, mean2, std2, target_tile_bytes=8 << 10)
    jax.block_until_ready((p1, p2, p3))
    for p, y in ((p1, y1), (p2, y2), (p3, y3)):
        np.testing.assert_allclose(np.asarray(p), np.asarray(ref(y, mean2, std2)),
                                   rtol=1e-6, atol=1e-6)

    print("KERNEL_OK")
</pallas_src>

<mosaic_0001>
module attributes {stable_mosaic.version = 11 : i64} {
  func.func @_normalize3_kernel(%arg0: i32, %arg1: i32, %arg2: memref<8x2xf32, #tpu.memory_space<vmem>>, %arg3: memref<8x256xf32, #tpu.memory_space<vmem>>, %arg4: memref<8x256xf32, #tpu.memory_space<vmem>>, %arg5: memref<8x256xf32, #tpu.memory_space<vmem>>, %arg6: memref<8x256xf32, #tpu.memory_space<vmem>>, %arg7: memref<8x256xf32, #tpu.memory_space<vmem>>, %arg8: memref<8x256xf32, #tpu.memory_space<vmem>>) attributes {dimension_semantics = [#tpu.dimension_semantics<parallel>, #tpu.dimension_semantics<parallel>], iteration_bounds = array<i64: 1, 1>, scalar_prefetch = 0 : i64, scratch_operands = 0 : i64, tpu.core_type = #tpu.core_type<tc>, window_params = [{transform_indices = @transform_0, window_bounds = array<i64: 8, 2>}, {transform_indices = @transform_1, window_bounds = array<i64: 8, 256>}, {transform_indices = @transform_2, window_bounds = array<i64: 8, 256>}, {transform_indices = @transform_3, window_bounds = array<i64: 8, 256>}, {transform_indices = @transform_4, window_bounds = array<i64: 8, 256>}, {transform_indices = @transform_5, window_bounds = array<i64: 8, 256>}, {transform_indices = @transform_6, window_bounds = array<i64: 8, 256>}]} {
    %c0 = arith.constant 0 : index
    %c0_0 = arith.constant 0 : index
    %0 = vector.load %arg2[%c0, %c0_0] : memref<8x2xf32, #tpu.memory_space<vmem>>, vector<8x1xf32>
    %c0_1 = arith.constant 0 : index
    %c1 = arith.constant 1 : index
    %1 = vector.load %arg2[%c0_1, %c1] : memref<8x2xf32, #tpu.memory_space<vmem>>, vector<8x1xf32>
    %c0_2 = arith.constant 0 : index
    %c0_3 = arith.constant 0 : index
    %2 = vector.load %arg3[%c0_2, %c0_3] : memref<8x256xf32, #tpu.memory_space<vmem>>, vector<8x256xf32>
    %3 = vector.broadcast %0 : vector<8x1xf32> to vector<8x256xf32>
    %4 = arith.subf %2, %3 : vector<8x256xf32>
    %5 = vector.broadcast %1 : vector<8x1xf32> to vector<8x256xf32>
    %6 = arith.mulf %4, %5 : vector<8x256xf32>
    %c0_4 = arith.constant 0 : index
    %c0_5 = arith.constant 0 : index
    %7 = vector.load %arg6[%c0_4, %c0_5] : memref<8x256xf32, #tpu.memory_space<vmem>>, vector<8x256xf32>
    tpu.vector_store %arg6[%c0_4, %c0_5], %6 {strides = array<i32>} : memref<8x256xf32, #tpu.memory_space<vmem>>, vector<8x256xf32>,
    %c0_6 = arith.constant 0 : index
    %c0_7 = arith.constant 0 : index
    %8 = vector.load %arg4[%c0_6, %c0_7] : memref<8x256xf32, #tpu.memory_space<vmem>>, vector<8x256xf32>
    %9 = vector.broadcast %0 : vector<8x1xf32> to vector<8x256xf32>
    %10 = arith.subf %8, %9 : vector<8x256xf32>
    %11 = vector.broadcast %1 : vector<8x1xf32> to vector<8x256xf32>
    %12 = arith.mulf %10, %11 : vector<8x256xf32>
    %c0_8 = arith.constant 0 : index
    %c0_9 = arith.constant 0 : index
    %13 = vector.load %arg7[%c0_8, %c0_9] : memref<8x256xf32, #tpu.memory_space<vmem>>, vector<8x256xf32>
    tpu.vector_store %arg7[%c0_8, %c0_9], %12 {strides = array<i32>} : memref<8x256xf32, #tpu.memory_space<vmem>>, vector<8x256xf32>,
    %c0_10 = arith.constant 0 : index
    %c0_11 = arith.constant 0 : index
    %14 = vector.load %arg5[%c0_10, %c0_11] : memref<8x256xf32, #tpu.memory_space<vmem>>, vector<8x256xf32>
    %15 = vector.broadcast %0 : vector<8x1xf32> to vector<8x256xf32>
    %16 = arith.subf %14, %15 : vector<8x256xf32>
    %17 = vector.broadcast %1 : vector<8x1xf32> to vector<8x256xf32>
    %18 = arith.mulf %16, %17 : vector<8x256xf32>
    %c0_12 = arith.constant 0 : index
    %c0_13 = arith.constant 0 : index
    %19 = vector.load %arg8[%c0_12, %c0_13] : memref<8x256xf32, #tpu.memory_space<vmem>>, vector<8x256xf32>
    tpu.vector_store %arg8[%c0_12, %c0_13], %18 {strides = array<i32>} : memref<8x256xf32, #tpu.memory_space<vmem>>, vector<8x256xf32>,
    return
  }
  func.func @transform_0(%arg0: i32, %arg1: i32) -> (i32, i32) {
    %c0_i32 = arith.constant 0 : i32
    %c0_i32_0 = arith.constant 0 : i32
    return %arg0, %c0_i32 : i32, i32
  }
  func.func @transform_1(%arg0: i32, %arg1: i32) -> (i32, i32) {
    %c0_i32 = arith.constant 0 : i32
    return %arg0, %arg1 : i32, i32
  }
  func.func @transform_2(%arg0: i32, %arg1: i32) -> (i32, i32) {
    %c0_i32 = arith.constant 0 : i32
    return %arg0, %arg1 : i32, i32
  }
  func.func @transform_3(%arg0: i32, %arg1: i32) -> (i32, i32) {
    %c0_i32 = arith.constant 0 : i32
    return %arg0, %arg1 : i32, i32
  }
  func.func @transform_4(%arg0: i32, %arg1: i32) -> (i32, i32) {
    %c0_i32 = arith.constant 0 : i32
    return %arg0, %arg1 : i32, i32
  }
  func.func @transform_5(%arg0: i32, %arg1: i32) -> (i32, i32) {
    %c0_i32 = arith.constant 0 : i32
    return %arg0, %arg1 : i32, i32
  }
  func.func @transform_6(%arg0: i32, %arg1: i32) -> (i32, i32) {
    %c0_i32 = arith.constant 0 : i32
    return %arg0, %arg1 : i32, i32
  }
}

</mosaic_0001>

<llo_original>
// kernel: tpu_custom_call.1
$region0: #{tpu_custom_call.1}
  #allocation0 [shape = 'u32[]', space=smem, size = 0x4, offset = 0x4, fixed_abs, tag = 'smem constant byte address 0x4 - core index']
  #allocation1 [shape = 'u32[144,128]{1,0:T(1,128)}', space=vmem, size = 0x12000, scoped, tag = 'internal scratch']
  %s0 = inlined_call_operand.vmem [shape: f32[8,2], index: 0, kind: input, shape index: {}]
  %s1 = inlined_call_operand.hbm [shape: f32[8,256], index: 1, kind: input, shape index: {}]
  %s2 = inlined_call_operand.vmem [shape: f32[8,256], index: 2, kind: input, shape index: {}]
  %s3 = inlined_call_operand.hbm [shape: f32[8,256], index: 3, kind: input, shape index: {}]
  %s4 = inlined_call_operand.hbm [shape: f32[8,256], index: 4, kind: output, shape index: {0}]
  %s5 = inlined_call_operand.hbm [shape: f32[8,256], index: 5, kind: output, shape index: {1}]
  %s6 = inlined_call_operand.hbm [shape: f32[8,256], index: 6, kind: output, shape index: {2}]
  %7 = xla_tuple %s4, %s5, %s6
  %s8 = sld [smem:[#allocation0]]
  $region50: #{tpu_custom_call.1} parent=0
    _
  %s10 = ssub.s32 1, %s8
  %s11 = scalar_select 0, %s10, %s8
  $region1: #{tpu_custom_call.1} parent=0
    #allocation2 [shape = 'u8[8192]{0}', space=vmem, size = 0x2000, scoped, tag = 'input window, operand 1, single buffered']
    #allocation3 [shape = 's32[1]{0}', space=sflag, size = 0x4, scoped, tag = 'scoped memory for tpu_custom_call.1']
    #allocation4 [shape = 's32[1]{0}', space=sflag, size = 0x4, scoped, tag = 'scoped memory for tpu_custom_call.1']
    #allocation5 [shape = 'u8[8192]{0}', space=vmem, size = 0x2000, scoped, tag = 'input window, operand 3, single buffered']
    #allocation6 [shape = 's32[1]{0}', space=sflag, size = 0x4, scoped, tag = 'scoped memory for tpu_custom_call.1']
    #allocation7 [shape = 'u8[8192]{0}', space=vmem, size = 0x2000, scoped, tag = 'output window, operand 0, single buffered']
    #allocation8 [shape = 'u8[8192]{0}', space=vmem, size = 0x2000, scoped, tag = 'output window, operand 1, single buffered']
    #allocation9 [shape = 's32[1]{0}', space=sflag, size = 0x4, scoped, tag = 'scoped memory for tpu_custom_call.1']
    #allocation10 [shape = 'u8[8192]{0}', space=vmem, size = 0x2000, scoped, tag = 'output window, operand 2, single buffered']
    %12 = vsyncpa [#allocation3], 0
    %13 = vsyncpa [#allocation6], 0
    %14 = vsyncpa [#allocation4], 0
    %15 = vsyncpa [#allocation9], 0
    // Predicated region
    $region2: #{tpu_custom_call.1} parent=1 // pred_check
      _
    $region3: #{tpu_custom_call.1} parent=1 // pred_check_branch
      %17 = sbr.rel (0) target = $region5
    $region4: #{tpu_custom_call.1} parent=1 // pred_region
      _
    $region5: #{tpu_custom_call.1} parent=1 // pred_fallthru
      _
    // Predicated region
    $region6: #{tpu_custom_call.1} parent=1 // pred_check
      _
    $region7: #{tpu_custom_call.1} parent=1 // pred_check_branch
      %19 = sbr.rel (0) target = $region9
    $region8: #{tpu_custom_call.1} parent=1 // pred_region
      %s21 = ssub.s32 256, 256
      %22 = vsyncadd [#allocation3], %s21
      %s24 = sshll.u32 [#allocation2], 4
      %s25 = int_to_ptr.vmem [resolvable:$true] %s24
      %27 = dma.hbm_to_vmem [thread:$0]  %s1, 256, %s25, [#allocation3]
    $region9: #{tpu_custom_call.1} parent=1 // pred_fallthru
      _
    // Predicated region
    $region10: #{tpu_custom_call.1} parent=1 // pred_check
      _
    $region11: #{tpu_custom_call.1} parent=1 // pred_check_branch
      %29 = sbr.rel (0) target = $region13
    $region12: #{tpu_custom_call.1} parent=1 // pred_region
      _
    $region13: #{tpu_custom_call.1} parent=1 // pred_fallthru
      _
    // Predicated region
    $region14: #{tpu_custom_call.1} parent=1 // pred_check
      _
    $region15: #{tpu_custom_call.1} parent=1 // pred_check_branch
      %31 = sbr.rel (0) target = $region17
    $region16: #{tpu_custom_call.1} parent=1 // pred_region
      %s33 = ssub.s32 256, 256
      %34 = vsyncadd [#allocation6], %s33
      %s36 = sshll.u32 [#allocation5], 4
      %s37 = int_to_ptr.vmem [resolvable:$true] %s36
      %39 = dma.hbm_to_vmem [thread:$0]  %s3, 256, %s37, [#allocation6]
    $region17: #{tpu_custom_call.1} parent=1 // pred_fallthru
      _
    // Predicated region
    $region18: #{tpu_custom_call.1} parent=1 // pred_check
      _
    $region19: #{tpu_custom_call.1} parent=1 // pred_check_branch
      %41 = sbr.rel (0) target = $region21
    $region20: #{tpu_custom_call.1} parent=1 // pred_region
      %42 = dma.done [#allocation3], 256
    $region21: #{tpu_custom_call.1} parent=1 // pred_fallthru
      _
    // Predicated region
    $region22: #{tpu_custom_call.1} parent=1 // pred_check
      _
    $region23: #{tpu_custom_call.1} parent=1 // pred_check_branch
      %44 = sbr.rel (0) target = $region25
    $region24: #{tpu_custom_call.1} parent=1 // pred_region
      %45 = dma.done [#allocation6], 256
    $region25: #{tpu_custom_call.1} parent=1 // pred_fallthru
      _
    %v46 = vld [vmem:[%s0] sm:$0xff]
    %v47 = vld [vmem:[#allocation2] sm:$0xff]
    %v48 = vld [vmem:[#allocation2 + $0x8] sm:$0xff]
    %50 = vset.pattern.permute.xlu0 0
    %51 = vperm.xlu0 %50, %v46
    %v52 = vpop.permute.xlu0 %51
    %v54 = vsub.f32 %v47, %v52
    %v55 = vsub.f32 %v48, %v52
    %56 = vset.pattern.permute.xlu0 1
    %57 = vperm.xlu0 %56, %v46
    %v58 = vpop.permute.xlu0 %57
    %v60 = vmul.f32 %v54, %v58
    %v61 = vmul.f32 %v55, %v58
    %62 = vst [vmem:[#allocation7] sm:$0xff] %v60
    %63 = vst [vmem:[#allocation7 + $0x8] sm:$0xff] %v61
    %v64 = vld [vmem:[%s2] sm:$0xff]
    %v65 = vld [vmem:[%s2 + $0x8] sm:$0xff]
    %v66 = vsub.f32 %v64, %v52
    %v67 = vsub.f32 %v65, %v52
    %v68 = vmul.f32 %v66, %v58
    %v69 = vmul.f32 %v67, %v58
    %70 = vst [vmem:[#allocation8] sm:$0xff] %v68
    %71 = vst [vmem:[#allocation8 + $0x8] sm:$0xff] %v69
    %v72 = vld [vmem:[#allocation5] sm:$0xff]
    %v73 = vld [vmem:[#allocation5 + $0x8] sm:$0xff]
    %v74 = vsub.f32 %v72, %v52
    %v75 = vsub.f32 %v73, %v52
    %v76 = vmul.f32 %v74, %v58
    %v77 = vmul.f32 %v75, %v58
    %78 = vst [vmem:[#allocation10] sm:$0xff] %v76
    %79 = vst [vmem:[#allocation10 + $0x8] sm:$0xff] %v77
    // Predicated region
    $region26: #{tpu_custom_call.1} parent=1 // pred_check
      _
    $region27: #{tpu_custom_call.1} parent=1 // pred_check_branch
      %81 = sbr.rel (0) target = $region29
    $region28: #{tpu_custom_call.1} parent=1 // pred_region
      %s83 = ssub.s32 256, 256
      %84 = vsyncadd [#allocation4], %s83
      %s86 = sshll.u32 [#allocation7], 4
      %s87 = int_to_ptr.vmem [resolvable:$true] %s86
      %89 = dma.vmem_to_hbm [thread:$0]  %s87, 256, %s4, [#allocation4]
    $region29: #{tpu_custom_call.1} parent=1 // pred_fallthru
      _
    // Predicated region
    $region30: #{tpu_custom_call.1} parent=1 // pred_check
      _
    $region31: #{tpu_custom_call.1} parent=1 // pred_check_branch
      %91 = sbr.rel (0) target = $region33
    $region32: #{tpu_custom_call.1} parent=1 // pred_region
      %s93 = ssub.s32 256, 256
      %94 = vsyncadd [#allocation9], %s93
      %s96 = sshll.u32 [#allocation8], 4
      %s97 = int_to_ptr.vmem [resolvable:$true] %s96
      %99 = dma.vmem_to_hbm [thread:$0]  %s97, 256, %s5, [#allocation9]
    $region33: #{tpu_custom_call.1} parent=1 // pred_fallthru
      _
    // Predicated region
    $region34: #{tpu_custom_call.1} parent=1 // pred_check
      _
    $region35: #{tpu_custom_call.1} parent=1 // pred_check_branch
      %101 = sbr.rel (0) target = $region37
    $region36: #{tpu_custom_call.1} parent=1 // pred_region
      %s103 = ssub.s32 256, 256
      %104 = vsyncadd [#allocation9], %s103
      %s106 = sshll.u32 [#allocation10], 4
      %s107 = int_to_ptr.vmem [resolvable:$true] %s106
      %109 = dma.vmem_to_hbm [thread:$0]  %s107, 256, %s6, [#allocation9]
    $region37: #{tpu_custom_call.1} parent=1 // pred_fallthru
      _
    // Predicated region
    $region38: #{tpu_custom_call.1} parent=1 // pred_check
      _
    $region39: #{tpu_custom_call.1} parent=1 // pred_check_branch
      %111 = sbr.rel (0) target = $region41
    $region40: #{tpu_custom_call.1} parent=1 // pred_region
      %112 = dma.done [#allocation4], 256
    $region41: #{tpu_custom_call.1} parent=1 // pred_fallthru
      _
    // Predicated region
    $region42: #{tpu_custom_call.1} parent=1 // pred_check
      _
    $region43: #{tpu_custom_call.1} parent=1 // pred_check_branch
      %114 = sbr.rel (0) target = $region45
    $region44: #{tpu_custom_call.1} parent=1 // pred_region
      %115 = dma.done [#allocation9], 256
    $region45: #{tpu_custom_call.1} parent=1 // pred_fallthru
      _
    // Predicated region
    $region46: #{tpu_custom_call.1} parent=1 // pred_check
      _
    $region47: #{tpu_custom_call.1} parent=1 // pred_check_branch
      %117 = sbr.rel (0) target = $region49
    $region48: #{tpu_custom_call.1} parent=1 // pred_region
      %118 = dma.done [#allocation9], 256
    $region49: #{tpu_custom_call.1} parent=1 // pred_fallthru
      _
    %119 = vsyncpa [#allocation3], 1
    %120 = vsyncpa [#allocation6], 1
    %121 = vsyncpa [#allocation4], 1
    %122 = vsyncpa [#allocation9], 1

</llo_original>
